<compile_context>
chip_gen: v7x
topology: tpu7x:2x2x1
jax: 0.10.0
libtpu: 0.0.40
codegen_flags: <defaults>
</compile_context>

<pallas_src>
import functools

import jax
import jax.numpy as jnp
from jax.experimental import pallas as pl
from jax.experimental.pallas import tpu as pltpu

BN_EPS = 1e-5
# Sized well under v7x's 64 MiB physical VMEM; also fine on v5e/v6e (128 MiB).
_VMEM_LIMIT_BYTES = 32 * 1024 * 1024
# Max size of the VMEM-resident conv output for the fused single-call path.
_FUSED_VMEM_BUDGET_BYTES = 16 * 1024 * 1024


def _round_up(x, m):
    return (x + m - 1) // m * m


# ----------------------------- Fused single-call kernel ------------------------------------------
def convreg_fused_kernel(pt_ref, w_ref, gb_ref, o_ref,
                         y_store, stats_ref, ss_ref, *, inv_m, apply_relu):
    """grid = (2 phases, n_tiles).

    Phase 0: conv tile (MXU) -> VMEM-resident y_store, accumulate per-channel sum/sumsq.
    Phase 1 (first step): fold batch stats + gamma/beta into per-channel scale/shift.
    Phase 1: out = max(y * scale + shift, 0) streamed tile-by-tile to HBM.
    """
    p = pl.program_id(0)
    i = pl.program_id(1)
    tm = o_ref.shape[1]

    @pl.when((p == 0) & (i == 0))
    def _():
        stats_ref[...] = jnp.zeros_like(stats_ref)

    @pl.when(p == 0)
    def _():
        # Conv as GEMM: [t_C, K_pad](bf16) @ [K_pad, tm](bf16) -> [t_C, tm] f32.
        y = jnp.dot(w_ref[...], pt_ref[...], preferred_element_type=jnp.float32)
        off = pl.multiple_of(i * tm, 128)
        y_store[:, pl.ds(off, tm)] = y
        # Padded M columns are exactly zero -> contribute 0 to the batch statistics.
        stats_ref[:, 0:1] += jnp.sum(y, axis=1, keepdims=True)
        stats_ref[:, 1:2] += jnp.sum(y * y, axis=1, keepdims=True)

    @pl.when((p == 1) & (i == 0))
    def _():
        mean = stats_ref[:, 0:1] * inv_m
        var = jnp.maximum(stats_ref[:, 1:2] * inv_m - mean * mean, 0.0)
        scale = gb_ref[:, 0:1] * jax.lax.rsqrt(var + BN_EPS)   # gamma * rsqrt(var+eps)
        ss_ref[:, 0:1] = scale
        ss_ref[:, 1:2] = gb_ref[:, 1:2] - mean * scale          # beta - mean*scale

    @pl.when(p == 1)
    def _():
        off = pl.multiple_of(i * tm, 128)
        yv = y_store[:, pl.ds(off, tm)]
        out = yv * ss_ref[:, 0:1] + ss_ref[:, 1:2]              # one FMA per element
        if apply_relu:
            out = jnp.maximum(out, 0.0)
        o_ref[...] = out.astype(o_ref.dtype)


# ----------------------------- Fallback pass 1: conv tile + stats --------------------------------
def conv_stats_kernel(pt_ref, w_ref, y_ref, stats_ref):
    i = pl.program_id(0)

    @pl.when(i == 0)
    def _():
        stats_ref[...] = jnp.zeros_like(stats_ref)

    y = jnp.dot(w_ref[...], pt_ref[...], preferred_element_type=jnp.float32)
    y_ref[...] = y
    stats_ref[:, 0:1] += jnp.sum(y, axis=1, keepdims=True)
    stats_ref[:, 1:2] += jnp.sum(y * y, axis=1, keepdims=True)


# ----------------------------- Fallback pass 2: normalize + affine + ReLU ------------------------
def bn_act_kernel(y_ref, ss_ref, o_ref, *, apply_relu):
    scale = ss_ref[:, 0:1]
    shift = ss_ref[:, 1:2]
    out = y_ref[...] * scale + shift
    if apply_relu:
        out = jnp.maximum(out, 0.0)
    o_ref[...] = out.astype(o_ref.dtype)


# ----------------------------- im2col (transposed) -----------------------------------------------
def _im2col_T_s2_p1_k3(x):
    """Transposed im2col for 3x3 / stride-2 / pad-1.

    x: [N, C, H, W]  ->  P^T: [C*9, N*OH*OW] (channel-major patch flattening, matching
    PyTorch's OIHW weight flattening). Built from 9 static strided slices only.
    """
    N, C, H, W = x.shape
    OH = (H + 2 - 3) // 2 + 1
    OW = (W + 2 - 3) // 2 + 1
    xp = jnp.pad(x, ((0, 0), (0, 0), (1, 1), (1, 1)))
    cols = []
    for kh in range(3):
        for kw in range(3):
            cols.append(xp[:, :, kh:kh + 2 * OH - 1:2, kw:kw + 2 * OW - 1:2])  # [N,C,OH,OW]
    p = jnp.stack(cols, axis=0)        # [9, N, C, OH, OW], k = kh*3 + kw
    p = p.transpose(2, 0, 1, 3, 4)     # [C, 9, N, OH, OW]
    return p.reshape(C * 9, N * OH * OW), (N, OH, OW)


# ----------------------------- Wrapper ------------------------------------------------------------
def convreg_forward(x, conv_w, conv_b, bn_gamma, bn_beta, *,
                    use_relu=True, tm=None, matmul_dtype=jnp.bfloat16):
    """x: [N, s_C, H, W] NCHW. conv_w: [t_C, s_C, 3, 3]. Returns NCHW [N, t_C, H//2, W//2].

    conv_b is accepted for API fidelity but is not needed: training-mode BatchNorm's
    mean subtraction cancels any per-channel additive constant exactly.
    """
    del conv_b  # mathematically a no-op before training-mode BN
    N, C, H, W = x.shape
    t_C = conv_w.shape[0]

    pt, (N, OH, OW) = _im2col_T_s2_p1_k3(x)
    K, M = pt.shape

    if tm is None:
        tm = min(512, _round_up(M, 128))
    tm = _round_up(tm, 128)            # lane-dense tile (multiple of 128 lanes)
    M_pad = _round_up(M, tm)
    K_pad = _round_up(K, 128)          # aligned, unmasked loads + clean MXU K

    pt = jnp.pad(pt, ((0, K_pad - K), (0, M_pad - M))).astype(matmul_dtype)
    w_mat = jnp.pad(conv_w.reshape(t_C, K), ((0, 0), (0, K_pad - K))).astype(matmul_dtype)
    gb = jnp.stack([bn_gamma, bn_beta], axis=1).astype(jnp.float32)   # [t_C, 2]

    n_tiles = M_pad // tm
    inv_m = 1.0 / float(M)             # divide by true M; padded columns contributed zeros

    y_store_bytes = t_C * M_pad * 4

    if y_store_bytes <= _FUSED_VMEM_BUDGET_BYTES:
        # ---- fused single-call path: conv output never touches HBM ----
        out_t = pl.pallas_call(
            functools.partial(convreg_fused_kernel, inv_m=inv_m, apply_relu=use_relu),
            out_shape=jax.ShapeDtypeStruct((t_C, M_pad), jnp.float32),
            grid=(2, n_tiles),
            in_specs=[
                # phase 0: stream patch tiles; phase 1: pin block 0 (no redundant refetch).
                pl.BlockSpec((K_pad, tm), lambda p, i: (0, i * (1 - p))),
                pl.BlockSpec((t_C, K_pad), lambda p, i: (0, 0)),
                pl.BlockSpec((t_C, 2), lambda p, i: (0, 0)),
            ],
            # phase 0: hold block 0 (nothing written back); phase 1: stream tiles out.
            out_specs=pl.BlockSpec((t_C, tm), lambda p, i: (0, i * p)),
            scratch_shapes=[
                pltpu.VMEM((t_C, M_pad), jnp.float32),   # resident conv output
                pltpu.VMEM((t_C, 2), jnp.float32),       # sum / sumsq
                pltpu.VMEM((t_C, 2), jnp.float32),       # folded scale / shift
            ],
            compiler_params=pltpu.CompilerParams(
                dimension_semantics=("arbitrary", "arbitrary"),
                vmem_limit_bytes=_VMEM_LIMIT_BYTES),
        )(pt, w_mat, gb)
    else:
        # ---- two-pass fallback for conv outputs too large to keep resident in VMEM ----
        y_flat, stats = pl.pallas_call(
            conv_stats_kernel,
            out_shape=(jax.ShapeDtypeStruct((t_C, M_pad), jnp.float32),
                       jax.ShapeDtypeStruct((t_C, 2), jnp.float32)),
            grid=(n_tiles,),
            in_specs=[
                pl.BlockSpec((K_pad, tm), lambda i: (0, i)),
                pl.BlockSpec((t_C, K_pad), lambda i: (0, 0)),
            ],
            out_specs=(
                pl.BlockSpec((t_C, tm), lambda i: (0, i)),
                pl.BlockSpec((t_C, 2), lambda i: (0, 0)),
            ),
            compiler_params=pltpu.CompilerParams(
                dimension_semantics=("arbitrary",),
                vmem_limit_bytes=_VMEM_LIMIT_BYTES),
        )(pt, w_mat)

        mean = stats[:, 0] * inv_m
        var = jnp.maximum(stats[:, 1] * inv_m - mean * mean, 0.0)
        scale = bn_gamma * jax.lax.rsqrt(var + BN_EPS)
        shift = bn_beta - mean * scale
        ss = jnp.stack([scale, shift], axis=1)

        out_t = pl.pallas_call(
            functools.partial(bn_act_kernel, apply_relu=use_relu),
            out_shape=jax.ShapeDtypeStruct((t_C, M_pad), jnp.float32),
            grid=(n_tiles,),
            in_specs=[
                pl.BlockSpec((t_C, tm), lambda i: (0, i)),
                pl.BlockSpec((t_C, 2), lambda i: (0, 0)),
            ],
            out_specs=pl.BlockSpec((t_C, tm), lambda i: (0, i)),
            input_output_aliases={0: 0},
            compiler_params=pltpu.CompilerParams(
                dimension_semantics=("parallel",),
                vmem_limit_bytes=_VMEM_LIMIT_BYTES),
        )(y_flat, ss)

    # [t_C, M] -> NCHW (small relayout of the t_C/N leading dims only)
    return out_t[:, :M].reshape(t_C, N, OH, OW).transpose(1, 0, 2, 3)


# ----------------------------- Pure-JAX reference --------------------------------------------------
def convreg_reference(x, conv_w, conv_b, bn_gamma, bn_beta, *,
                      use_relu=True, matmul_dtype=jnp.float32):
    """Reference forward. matmul_dtype=bfloat16 models bf16 MXU operands with f32 accumulation."""
    xc = x.astype(matmul_dtype).astype(jnp.float32)
    wc = conv_w.astype(matmul_dtype).astype(jnp.float32)
    y = jax.lax.conv_general_dilated(
        xc, wc, window_strides=(2, 2), padding=((1, 1), (1, 1)),
        dimension_numbers=("NCHW", "OIHW", "NCHW"))
    y = y + conv_b[None, :, None, None]
    mean = jnp.mean(y, axis=(0, 2, 3), keepdims=True)
    var = jnp.mean(jnp.square(y - mean), axis=(0, 2, 3), keepdims=True)
    y = (y - mean) * jax.lax.rsqrt(var + BN_EPS)
    y = bn_gamma[None, :, None, None] * y + bn_beta[None, :, None, None]
    return jnp.maximum(y, 0.0) if use_relu else y


if __name__ == "__main__":
    # s_shape=(3,4,16,16), t_shape=(3,8,8,8)  ->  s_H == 2*t_H branch.
    N, s_C, H, W = 3, 4, 16, 16
    t_C = 8

    key = jax.random.PRNGKey(0)
    kx, kw, kb, kg, kbe = jax.random.split(key, 5)
    x = jax.random.normal(kx, (N, s_C, H, W), dtype=jnp.float32)
    conv_w = jax.random.normal(kw, (t_C, s_C, 3, 3), dtype=jnp.float32) * 0.1
    conv_b = jax.random.normal(kb, (t_C,), dtype=jnp.float32) * 0.1
    bn_gamma = 1.0 + 0.1 * jax.random.normal(kg, (t_C,), dtype=jnp.float32)
    bn_beta = 0.1 * jax.random.normal(kbe, (t_C,), dtype=jnp.float32)

    # tm=128 -> M = 3*8*8 = 192 gives a 2-tile grid with a half-padded last tile,
    # exercising the tiled stats accumulation, phase transition, and the M-padding path.
    out = convreg_forward(x, conv_w, conv_b, bn_gamma, bn_beta, tm=128)
    out = jax.block_until_ready(out)
    assert out.shape == (N, t_C, H // 2, W // 2)

    # Strict check vs. a reference with the same bf16 operand rounding (f32 accumulation).
    ref_bf16 = convreg_reference(x, conv_w, conv_b, bn_gamma, bn_beta,
                                 matmul_dtype=jnp.bfloat16)
    assert jnp.allclose(out, ref_bf16, rtol=1e-3, atol=1e-3)

    # Loose check vs. the pure-f32 forward (difference is only bf16 input rounding).
    ref_f32 = convreg_reference(x, conv_w, conv_b, bn_gamma, bn_beta,
                                matmul_dtype=jnp.float32)
    assert jnp.allclose(out, ref_f32, rtol=5e-2, atol=5e-2)

    # use_relu=False branch of the module.
    out_nr = convreg_forward(x, conv_w, conv_b, bn_gamma, bn_beta, use_relu=False, tm=128)
    out_nr = jax.block_until_ready(out_nr)
    ref_nr = convreg_reference(x, conv_w, conv_b, bn_gamma, bn_beta,
                               use_relu=False, matmul_dtype=jnp.bfloat16)
    assert jnp.allclose(out_nr, ref_nr, rtol=1e-3, atol=1e-3)

    print("KERNEL_OK")
</pallas_src>

<mosaic_0001>
module attributes {stable_mosaic.version = 11 : i64} {
  func.func @convreg_fused_kernel(%arg0: i32, %arg1: i32, %arg2: memref<128x128xbf16, #tpu.memory_space<vmem>>, %arg3: memref<8x128xbf16, #tpu.memory_space<vmem>>, %arg4: memref<8x2xf32, #tpu.memory_space<vmem>>, %arg5: memref<8x128xf32, #tpu.memory_space<vmem>>, %arg6: memref<8x256xf32, #tpu.memory_space<vmem>>, %arg7: memref<8x2xf32, #tpu.memory_space<vmem>>, %arg8: memref<8x2xf32, #tpu.memory_space<vmem>>) attributes {dimension_semantics = [#tpu.dimension_semantics<arbitrary>, #tpu.dimension_semantics<arbitrary>], iteration_bounds = array<i64: 2, 2>, scalar_prefetch = 0 : i64, scratch_operands = 3 : i64, tpu.core_type = #tpu.core_type<tc>, window_params = [{transform_indices = @transform_0, window_bounds = array<i64: 128, 128>}, {pipeline_mode = #tpu.pipeline_mode<synchronous>, transform_indices = @transform_1, window_bounds = array<i64: 8, 128>}, {pipeline_mode = #tpu.pipeline_mode<synchronous>, transform_indices = @transform_2, window_bounds = array<i64: 8, 2>}, {transform_indices = @transform_3, window_bounds = array<i64: 8, 128>}]} {
    %c0_i32 = arith.constant 0 : i32
    %0 = arith.cmpi eq, %arg0, %c0_i32 : i32
    %c0_i32_0 = arith.constant 0 : i32
    %1 = arith.cmpi eq, %arg1, %c0_i32_0 : i32
    %2 = arith.andi %0, %1 : i1
    %3 = arith.extui %2 : i1 to i32
    %c0_i32_1 = arith.constant 0 : i32
    %4 = arith.cmpi ne, %3, %c0_i32_1 : i32
    scf.if %4 {
      %cst = arith.constant 0.000000e+00 : f32
      %16 = vector.broadcast %cst : f32 to vector<8x2xf32>
      %c0 = arith.constant 0 : index
      %c0_8 = arith.constant 0 : index
      %17 = vector.load %arg7[%c0, %c0_8] : memref<8x2xf32, #tpu.memory_space<vmem>>, vector<8x2xf32>
      tpu.vector_store %arg7[%c0, %c0_8], %16 {strides = array<i32>} : memref<8x2xf32, #tpu.memory_space<vmem>>, vector<8x2xf32>,
    } else {
    }
    %c0_i32_2 = arith.constant 0 : i32
    %5 = arith.cmpi eq, %arg0, %c0_i32_2 : i32
    %6 = arith.extui %5 : i1 to i32
    %c0_i32_3 = arith.constant 0 : i32
    %7 = arith.cmpi ne, %6, %c0_i32_3 : i32
    scf.if %7 {
      %c0 = arith.constant 0 : index
      %c0_8 = arith.constant 0 : index
      %16 = vector.load %arg3[%c0, %c0_8] : memref<8x128xbf16, #tpu.memory_space<vmem>>, vector<8x128xbf16>
      %c0_9 = arith.constant 0 : index
      %c0_10 = arith.constant 0 : index
      %17 = vector.load %arg2[%c0_9, %c0_10] : memref<128x128xbf16, #tpu.memory_space<vmem>>, vector<128x128xbf16>
      %cst = arith.constant dense<0.000000e+00> : vector<8x128xf32>
      %18 = tpu.matmul %16, %17, %cst {dimension_numbers = #tpu.dot_dimension_numbers<[1], [0], [0], [1], [0, 0, 1, 1], [], []>} : vector<8x128xbf16>, vector<128x128xbf16>, vector<8x128xf32> -> vector<8x128xf32>
      %c128_i32 = arith.constant 128 : i32
      %19 = arith.muli %arg1, %c128_i32 : i32
      %20 = tpu.assume_multiple %19, 128 : i32
      %c0_11 = arith.constant 0 : index
      %21 = arith.index_cast %20 : i32 to index
      %22 = vector.load %arg6[%c0_11, %21] : memref<8x256xf32, #tpu.memory_space<vmem>>, vector<8x128xf32>
      tpu.vector_store %arg6[%c0_11, %21], %18 {strides = array<i32>} : memref<8x256xf32, #tpu.memory_space<vmem>>, vector<8x128xf32>,
      %c0_12 = arith.constant 0 : index
      %c0_13 = arith.constant 0 : index
      %23 = vector.load %arg7[%c0_12, %c0_13] : memref<8x2xf32, #tpu.memory_space<vmem>>, vector<8x1xf32>
      %cst_14 = arith.constant dense<0.000000e+00> : vector<8xf32>
      %24 = vector.multi_reduction <add>, %18, %cst_14 [1] : vector<8x128xf32> to vector<8xf32>
      %25 = vector.shape_cast %24 : vector<8xf32> to vector<8x1xf32>
      %26 = arith.addf %23, %25 : vector<8x1xf32>
      %c0_15 = arith.constant 0 : index
      %c0_16 = arith.constant 0 : index
      %27 = vector.load %arg7[%c0_15, %c0_16] : memref<8x2xf32, #tpu.memory_space<vmem>>, vector<8x1xf32>
      tpu.vector_store %arg7[%c0_15, %c0_16], %26 {strides = array<i32>} : memref<8x2xf32, #tpu.memory_space<vmem>>, vector<8x1xf32>,
      %c0_17 = arith.constant 0 : index
      %c1 = arith.constant 1 : index
      %28 = vector.load %arg7[%c0_17, %c1] : memref<8x2xf32, #tpu.memory_space<vmem>>, vector<8x1xf32>
      %29 = arith.mulf %18, %18 : vector<8x128xf32>
      %cst_18 = arith.constant dense<0.000000e+00> : vector<8xf32>
      %30 = vector.multi_reduction <add>, %29, %cst_18 [1] : vector<8x128xf32> to vector<8xf32>
      %31 = vector.shape_cast %30 : vector<8xf32> to vector<8x1xf32>
      %32 = arith.addf %28, %31 : vector<8x1xf32>
      %c0_19 = arith.constant 0 : index
      %c1_20 = arith.constant 1 : index
      %33 = vector.load %arg7[%c0_19, %c1_20] : memref<8x2xf32, #tpu.memory_space<vmem>>, vector<8x1xf32>
      tpu.vector_store %arg7[%c0_19, %c1_20], %32 {strides = array<i32>} : memref<8x2xf32, #tpu.memory_space<vmem>>, vector<8x1xf32>,
    } else {
    }
    %c1_i32 = arith.constant 1 : i32
    %8 = arith.cmpi eq, %arg0, %c1_i32 : i32
    %c0_i32_4 = arith.constant 0 : i32
    %9 = arith.cmpi eq, %arg1, %c0_i32_4 : i32
    %10 = arith.andi %8, %9 : i1
    %11 = arith.extui %10 : i1 to i32
    %c0_i32_5 = arith.constant 0 : i32
    %12 = arith.cmpi ne, %11, %c0_i32_5 : i32
    scf.if %12 {
      %c0 = arith.constant 0 : index
      %c0_8 = arith.constant 0 : index
      %16 = vector.load %arg7[%c0, %c0_8] : memref<8x2xf32, #tpu.memory_space<vmem>>, vector<8x1xf32>
      %cst = arith.constant 0.00520833349 : f32
      %17 = vector.broadcast %cst : f32 to vector<8x1xf32>
      %18 = arith.mulf %16, %17 : vector<8x1xf32>
      %c0_9 = arith.constant 0 : index
      %c1 = arith.constant 1 : index
      %19 = vector.load %arg7[%c0_9, %c1] : memref<8x2xf32, #tpu.memory_space<vmem>>, vector<8x1xf32>
      %cst_10 = arith.constant 0.00520833349 : f32
      %20 = vector.broadcast %cst_10 : f32 to vector<8x1xf32>
      %21 = arith.mulf %19, %20 : vector<8x1xf32>
      %22 = arith.mulf %18, %18 : vector<8x1xf32>
      %23 = arith.subf %21, %22 : vector<8x1xf32>
      %cst_11 = arith.constant 0.000000e+00 : f32
      %24 = vector.broadcast %cst_11 : f32 to vector<8x1xf32>
      %25 = arith.maximumf %23, %24 : vector<8x1xf32>
      %c0_12 = arith.constant 0 : index
      %c0_13 = arith.constant 0 : index
      %26 = vector.load %arg4[%c0_12, %c0_13] : memref<8x2xf32, #tpu.memory_space<vmem>>, vector<8x1xf32>
      %cst_14 = arith.constant 9.99999974E-6 : f32
      %27 = vector.broadcast %cst_14 : f32 to vector<8x1xf32>
      %28 = arith.addf %25, %27 : vector<8x1xf32>
      %29 = math.rsqrt %28 : vector<8x1xf32>
      %30 = arith.mulf %26, %29 : vector<8x1xf32>
      %c0_15 = arith.constant 0 : index
      %c0_16 = arith.constant 0 : index
      %31 = vector.load %arg8[%c0_15, %c0_16] : memref<8x2xf32, #tpu.memory_space<vmem>>, vector<8x1xf32>
      tpu.vector_store %arg8[%c0_15, %c0_16], %30 {strides = array<i32>} : memref<8x2xf32, #tpu.memory_space<vmem>>, vector<8x1xf32>,
      %c0_17 = arith.constant 0 : index
      %c1_18 = arith.constant 1 : index
      %32 = vector.load %arg4[%c0_17, %c1_18] : memref<8x2xf32, #tpu.memory_space<vmem>>, vector<8x1xf32>
      %33 = arith.mulf %18, %30 : vector<8x1xf32>
      %34 = arith.subf %32, %33 : vector<8x1xf32>
      %c0_19 = arith.constant 0 : index
      %c1_20 = arith.constant 1 : index
      %35 = vector.load %arg8[%c0_19, %c1_20] : memref<8x2xf32, #tpu.memory_space<vmem>>, vector<8x1xf32>
      tpu.vector_store %arg8[%c0_19, %c1_20], %34 {strides = array<i32>} : memref<8x2xf32, #tpu.memory_space<vmem>>, vector<8x1xf32>,
    } else {
    }
    %c1_i32_6 = arith.constant 1 : i32
    %13 = arith.cmpi eq, %arg0, %c1_i32_6 : i32
    %14 = arith.extui %13 : i1 to i32
    %c0_i32_7 = arith.constant 0 : i32
    %15 = arith.cmpi ne, %14, %c0_i32_7 : i32
    scf.if %15 {
      %c128_i32 = arith.constant 128 : i32
      %16 = arith.muli %arg1, %c128_i32 : i32
      %17 = tpu.assume_multiple %16, 128 : i32
      %c0 = arith.constant 0 : index
      %18 = arith.index_cast %17 : i32 to index
      %19 = vector.load %arg6[%c0, %18] : memref<8x256xf32, #tpu.memory_space<vmem>>, vector<8x128xf32>
      %c0_8 = arith.constant 0 : index
      %c0_9 = arith.constant 0 : index
      %20 = vector.load %arg8[%c0_8, %c0_9] : memref<8x2xf32, #tpu.memory_space<vmem>>, vector<8x1xf32>
      %21 = vector.broadcast %20 : vector<8x1xf32> to vector<8x128xf32>
      %22 = arith.mulf %19, %21 : vector<8x128xf32>
      %c0_10 = arith.constant 0 : index
      %c1 = arith.constant 1 : index
      %23 = vector.load %arg8[%c0_10, %c1] : memref<8x2xf32, #tpu.memory_space<vmem>>, vector<8x1xf32>
      %24 = vector.broadcast %23 : vector<8x1xf32> to vector<8x128xf32>
      %25 = arith.addf %22, %24 : vector<8x128xf32>
      %cst = arith.constant 0.000000e+00 : f32
      %26 = vector.broadcast %cst : f32 to vector<8x128xf32>
      %27 = arith.maximumf %25, %26 : vector<8x128xf32>
      %c0_11 = arith.constant 0 : index
      %c0_12 = arith.constant 0 : index
      %28 = vector.load %arg5[%c0_11, %c0_12] : memref<8x128xf32, #tpu.memory_space<vmem>>, vector<8x128xf32>
      tpu.vector_store %arg5[%c0_11, %c0_12], %27 {strides = array<i32>} : memref<8x128xf32, #tpu.memory_space<vmem>>, vector<8x128xf32>,
    } else {
    }
    return
  }
  func.func @transform_0(%arg0: i32, %arg1: i32) -> (i32, i32) {
    %c1_i32 = arith.constant 1 : i32
    %0 = arith.subi %c1_i32, %arg0 : i32
    %1 = arith.muli %arg1, %0 : i32
    %c0_i32 = arith.constant 0 : i32
    %c0_i32_0 = arith.constant 0 : i32
    return %c0_i32, %1 : i32, i32
  }
  func.func @transform_1(%arg0: i32, %arg1: i32) -> (i32, i32) {
    %c0_i32 = arith.constant 0 : i32
    %c0_i32_0 = arith.constant 0 : i32
    %c0_i32_1 = arith.constant 0 : i32
    return %c0_i32, %c0_i32_0 : i32, i32
  }
  func.func @transform_2(%arg0: i32, %arg1: i32) -> (i32, i32) {
    %c0_i32 = arith.constant 0 : i32
    %c0_i32_0 = arith.constant 0 : i32
    %c0_i32_1 = arith.constant 0 : i32
    return %c0_i32, %c0_i32_0 : i32, i32
  }
  func.func @transform_3(%arg0: i32, %arg1: i32) -> (i32, i32) {
    %0 = arith.muli %arg1, %arg0 : i32
    %c0_i32 = arith.constant 0 : i32
    %c0_i32_0 = arith.constant 0 : i32
    return %c0_i32, %0 : i32, i32
  }
}

</mosaic_0001>

<llo_original>
// kernel: tpu_custom_call.1
$region0: #{tpu_custom_call.1}
  #allocation0 [shape = 'u32[]', space=smem, size = 0x4, offset = 0x4, fixed_abs, tag = 'smem constant byte address 0x4 - core index']
  #allocation1 [shape = 'u32[144,128]{1,0:T(1,128)}', space=vmem, size = 0x12000, scoped, tag = 'internal scratch']
  #allocation2 [shape = 'f32[8,256]{1,0:T(8,128)}', space=vmem, size = 0x2000, scoped, tag = 'scratch operand']
  #allocation3 [shape = 'f32[8,2]{1,0:T(8,128)}', space=vmem, size = 0x1000, scoped, tag = 'scratch operand']
  #allocation4 [shape = 'f32[8,2]{1,0:T(8,128)}', space=vmem, size = 0x1000, scoped, tag = 'scratch operand']
  %s0 = inlined_call_operand.hbm [shape: bf16[128,256], index: 0, kind: input, shape index: {}]
  %s1 = inlined_call_operand.vmem [shape: bf16[8,128], index: 1, kind: input, shape index: {}]
  %s2 = inlined_call_operand.vmem [shape: f32[8,2], index: 2, kind: input, shape index: {}]
  %s3 = inlined_call_operand.hbm [shape: f32[8,256], index: 3, kind: output, shape index: {}]
  %s4 = sld [smem:[#allocation0]]
  $region65: #{tpu_custom_call.1} parent=0
    _
  %s6 = ssub.s32 1, %s4
  %s7 = scalar_select 0, %s6, %s4
  $region1: #{tpu_custom_call.1} parent=0
    #allocation5 [shape = 'u8[65536]{0}', space=vmem, size = 0x10000, scoped, tag = 'input window, operand 0']
    #allocation6 [shape = 's32[2]{0}', space=sflag, size = 0x8, scoped, tag = 'scoped memory for tpu_custom_call.1']
    #allocation7 [shape = 's32[2]{0}', space=sflag, size = 0x8, scoped, tag = 'scoped memory for tpu_custom_call.1']
    #allocation8 [shape = 'u8[8192]{0}', space=vmem, size = 0x2000, scoped, tag = 'output window, operand 0']
    %8 = vsyncpa [#allocation6], 0
    %s9 = scalar_lea.sflag [#allocation6], 1
    %10 = vsyncpa %s9, 0
    %11 = vsyncpa [#allocation7], 0
    %s12 = scalar_lea.sflag [#allocation7], 1
    %13 = vsyncpa %s12, 0
    loop: start=0, step=1, limit=6
    $region2: #{tpu_custom_call.1} parent=1 // loop_pre_header
      _
    $region3: #{tpu_custom_call.1} parent=1 // loop_header
      %s15 = sphi 0, %s19
      %p16 = scmp.ge.s32.totalorder %s15, 6
      %s22 = sphi 0, %s34
      %s23 = sphi 0, %s30
      %s24 = sphi 0, %s22
      %s25 = sphi 0, %s23
      %s26 = sphi 0, %s24
      %s27 = sphi 0, %s25
      %s41 = sphi 0, %s43
      %s44 = sphi 0, %s41
      %s45 = sphi 0, %s44
      %s61 = sphi 0, %s45
      %s65 = sphi 0, %s65
      %s67 = sphi 0, %s65
      %s68 = sphi 0, %s67
      %s82 = sphi 0, %s68
      %s86 = sphi 0, %s86
      %s88 = sphi 0, %s86
      %s89 = sphi 0, %s88
      %s103 = sphi 0, %s89
      %s111 = sphi 0, %s113
      %s114 = sphi 0, %s111
      %s115 = sphi 0, %s114
      %s131 = sphi 0, %s115
    $region4: #{tpu_custom_call.1} parent=1 // loop_header_branch
      %18 = sbr.rel (%p16) target = $region8
    $region5: #{tpu_custom_call.1} parent=1 // loop_body
      %s20 = ssub.s32 %s15, 1
      %s21 = ssub.s32 %s15, 2
      %s28 = sadd.s32 1, %s23
      %p29 = scmp.ge.s32.totalorder %s28, 2
      %s30 = scalar_select %p29, 0, %s28
      %s31 = sadd.s32 1, %s22
      %s32 = scalar_select %p29, %s31, %s22
      %p33 = scmp.ge.s32.totalorder %s32, 2
      %s34 = scalar_select %p33, 0, %s32
      %s35 = ssub.s32 1, %s22
      %s36 = smul.u32 %s23, %s35
      %s37 = ssub.s32 1, %s34
      %s38 = smul.u32 %s30, %s37
      %s39 = ssub.s32 %s36, %s38
      %p40 = scmp.eq.s32.totalorder %s39, 0
      %s42 = sadd.s32 %s41, 1
      %s43 = scalar_select %p40, %s41, %s42
      %p46 = pneg %p40
      %p47 = scmp.eq.s32.totalorder %s15, 3
      %p48 = por %p46, %p47
      %p49 = scmp.ne.s32.totalorder %s41, %s44
      %p50 = scmp.eq.s32.totalorder %s15, 0
      %p51 = por %p49, %p50
      %p52 = scmp.ne.s32.totalorder %s41, %s44
      %p53 = scmp.eq.s32.totalorder %s20, 3
      %p54 = por %p52, %p53
      %p55 = scmp.ne.s32.totalorder %s44, %s45
      %p56 = scmp.eq.s32.totalorder %s20, 0
      %p57 = por %p55, %p56
      %p58 = scmp.ne.s32.totalorder %s44, %s45
      %p59 = scmp.eq.s32.totalorder %s21, 3
      %p60 = por %p58, %p59
      %p62 = scmp.ne.s32.totalorder %s45, %s61
      %p63 = scmp.eq.s32.totalorder %s21, 0
      %p64 = por %p62, %p63
      %s66 = sadd.s32 %s65, 1
      %p69 = scmp.eq.s32.totalorder %s15, 3
      %p70 = scmp.ne.s32.totalorder %s65, %s67
      %p71 = scmp.eq.s32.totalorder %s15, 0
      %p72 = por %p70, %p71
      %p73 = scmp.ne.s32.totalorder %s65, %s67
      %p74 = scmp.eq.s32.totalorder %s20, 3
      %p75 = por %p73, %p74
      %p76 = scmp.ne.s32.totalorder %s67, %s68
      %p77 = scmp.eq.s32.totalorder %s20, 0
      %p78 = por %p76, %p77
      %p79 = scmp.ne.s32.totalorder %s67, %s68
      %p80 = scmp.eq.s32.totalorder %s21, 3
      %p81 = por %p79, %p80
      %p83 = scmp.ne.s32.totalorder %s68, %s82
      %p84 = scmp.eq.s32.totalorder %s21, 0
      %p85 = por %p83, %p84
      %s87 = sadd.s32 %s86, 1
      %p90 = scmp.eq.s32.totalorder %s15, 3
      %p91 = scmp.ne.s32.totalorder %s86, %s88
      %p92 = scmp.eq.s32.totalorder %s15, 0
      %p93 = por %p91, %p92
      %p94 = scmp.ne.s32.totalorder %s86, %s88
      %p95 = scmp.eq.s32.totalorder %s20, 3
      %p96 = por %p94, %p95
      %p97 = scmp.ne.s32.totalorder %s88, %s89
      %p98 = scmp.eq.s32.totalorder %s20, 0
      %p99 = por %p97, %p98
      %p100 = scmp.ne.s32.totalorder %s88, %s89
      %p101 = scmp.eq.s32.totalorder %s21, 3
      %p102 = por %p100, %p101
      %p104 = scmp.ne.s32.totalorder %s89, %s103
      %p105 = scmp.eq.s32.totalorder %s21, 0
      %p106 = por %p104, %p105
      %s107 = smul.u32 %s23, %s22
      %s108 = smul.u32 %s30, %s34
      %s109 = ssub.s32 %s107, %s108
      %p110 = scmp.eq.s32.totalorder %s109, 0
      %s112 = sadd.s32 %s111, 1
      %s113 = scalar_select %p110, %s111, %s112
      %p116 = pneg %p110
      %p117 = scmp.eq.s32.totalorder %s15, 3
      %p118 = por %p116, %p117
      %p119 = scmp.ne.s32.totalorder %s111, %s114
      %p120 = scmp.eq.s32.totalorder %s15, 0
      %p121 = por %p119, %p120
      %p122 = scmp.ne.s32.totalorder %s111, %s114
      %p123 = scmp.eq.s32.totalorder %s20, 3
      %p124 = por %p122, %p123
      %p125 = scmp.ne.s32.totalorder %s114, %s115
      %p126 = scmp.eq.s32.totalorder %s20, 0
      %p127 = por %p125, %p126
      %p128 = scmp.ne.s32.totalorder %s114, %s115
      %p129 = scmp.eq.s32.totalorder %s21, 3
      %p130 = por %p128, %p129
      %p132 = scmp.ne.s32.totalorder %s115, %s131
      %p133 = scmp.eq.s32.totalorder %s21, 0
      %p134 = por %p132, %p133
      %p135 = scmp.le.s32.totalorder 1, %s15
      %p136 = scmp.lt.s32.totalorder %s15, 5
      %p137 = pnand %p135, %p136
      %p138 = pneg %p137
      // Predicated region
      $region9: #{tpu_custom_call.1} parent=5 // pred_check
        _
      $region10: #{tpu_custom_call.1} parent=5 // pred_check_branch
        %140 = sbr.rel (%p137) target = $region12
      $region11: #{tpu_custom_call.1} parent=5 // pred_region
        %s141 = ssub.s32 %s15, 1
        // Predicated region
        $region13: #{tpu_custom_call.1} parent=11 // pred_check
          %p142 = pneg %p78
        $region14: #{tpu_custom_call.1} parent=11 // pred_check_branch
          %144 = sbr.rel (%p142) target = $region16
        $region15: #{tpu_custom_call.1} parent=11 // pred_region
          _
        $region16: #{tpu_custom_call.1} parent=11 // pred_fallthru
          _
        // Predicated region
        $region17: #{tpu_custom_call.1} parent=11 // pred_check
          %p145 = pneg %p99
        $region18: #{tpu_custom_call.1} parent=11 // pred_check_branch
          %147 = sbr.rel (%p145) target = $region20
        $region19: #{tpu_custom_call.1} parent=11 // pred_region
          _
        $region20: #{tpu_custom_call.1} parent=11 // pred_fallthru
          _
      $region12: #{tpu_custom_call.1} parent=5 // pred_fallthru
        _
      %p148 = scmp.lt.s32.totalorder %s15, 4
      // Predicated region
      $region21: #{tpu_custom_call.1} parent=5 // pred_check
        %p149 = pneg %p148
      $region22: #{tpu_custom_call.1} parent=5 // pred_check_branch
        %151 = sbr.rel (%p149) target = $region24
      $region23: #{tpu_custom_call.1} parent=5 // pred_region
        // Predicated region
        $region25: #{tpu_custom_call.1} parent=23 // pred_check
          %p152 = pneg %p51
        $region26: #{tpu_custom_call.1} parent=23 // pred_check_branch
          %154 = sbr.rel (%p152) target = $region28
        $region27: #{tpu_custom_call.1} parent=23 // pred_region
          %s155 = sand.u32 %s41, 1
          %s156 = scalar_lea.sflag [#allocation6], %s155
          %s157 = sand.u32 %s41, 1
          %s158 = smul.addr %s157, 64
          %s159 = scalar_lea.vmem [#allocation5], %s158
          %s160 = ssub.s32 1, %s22
          %s161 = smul.u32 %s23, %s160
          %s163 = ssub.s32 1024, 1024
          %164 = vsyncadd %s156, %s163
          %s165 = smul.addr %s161, 64
          %s166 = scalar_lea.hbm %s0, %s165
          %s167 = sshll.u32 %s159, 4
          %s168 = int_to_ptr.vmem [resolvable:$true] %s167
          %173 = dma.hbm_to_vmem [thread:$0]  %s166, 1024, %s168, %s156, 128, 64, 4
        $region28: #{tpu_custom_call.1} parent=23 // pred_fallthru
          _
      $region24: #{tpu_custom_call.1} parent=5 // pred_fallthru
        _
      %p174 = scmp.le.s32.totalorder 1, %s15
      %p175 = scmp.lt.s32.totalorder %s15, 5
      %p176 = pnand %p174, %p175
      %p177 = pneg %p176
      // Predicated region
      $region29: #{tpu_custom_call.1} parent=5 // pred_check
        _
      $region30: #{tpu_custom_call.1} parent=5 // pred_check_branch
        %179 = sbr.rel (%p176) target = $region32
      $region31: #{tpu_custom_call.1} parent=5 // pred_region
        %s180 = ssub.s32 %s15, 1
        %s181 = sand.u32 %s44, 1
        %s182 = scalar_lea.sflag [#allocation6], %s181
        %s183 = sand.u32 %s44, 1
        %s184 = smul.addr %s183, 64
        %s185 = scalar_lea.vmem [#allocation5], %s184
        // Predicated region
        $region33: #{tpu_custom_call.1} parent=31 // pred_check
          %p186 = pneg %p57
        $region34: #{tpu_custom_call.1} parent=31 // pred_check_branch
          %188 = sbr.rel (%p186) target = $region36
        $region35: #{tpu_custom_call.1} parent=31 // pred_region
          %189 = dma.done %s182, 1024
        $region36: #{tpu_custom_call.1} parent=31 // pred_fallthru
          _
        %s190 = sand.u32 %s44, 1
        %s191 = scalar_lea.sflag [#allocation6], %s190
        %s192 = sand.u32 %s44, 1
        %s193 = smul.addr %s192, 64
        %s194 = scalar_lea.vmem [#allocation5], %s193
        %p195 = pneg %p57
        %p196 = pneg %p54
        %p197 = pneg %p78
        %p198 = pneg %p75
        %p199 = pneg %p99
        %p200 = pneg %p96
        %p201 = pneg %p127
        %p202 = pneg %p124
        %s203 = sand.u32 %s114, 1
        %s204 = scalar_lea.sflag [#allocation7], %s203
        %s205 = sand.u32 %s114, 1
        %s206 = smul.addr %s205, 8
        %s207 = scalar_lea.vmem [#allocation8], %s206
        %s208 = ssub.s32 1, %s24
        %s209 = smul.u32 %s25, %s208
        %s210 = smul.u32 %s25, %s24
        %p212 = scmp.eq.s32.totalorder %s24, 0
        %p213 = scmp.eq.s32.totalorder %s25, 0
        %p214 = pnand %p212, %p213
        %p215 = pneg %p214
        // Predicated region
        $region37: #{tpu_custom_call.1} parent=31 // pred_check
          _
        $region38: #{tpu_custom_call.1} parent=31 // pred_check_branch
          %217 = sbr.rel (%p214) target = $region40
        $region39: #{tpu_custom_call.1} parent=31 // pred_region
          %vm218 = vcmask 15360
          %219 = vst.msk [vmem:[#allocation3] sm:$0xff] %vm218, 0.0
        $region40: #{tpu_custom_call.1} parent=31 // pred_fallthru
          _
        // Predicated region
        $region41: #{tpu_custom_call.1} parent=31 // pred_check
          %p220 = pneg %p212
        $region42: #{tpu_custom_call.1} parent=31 // pred_check_branch
          %222 = sbr.rel (%p220) target = $region44
        $region43: #{tpu_custom_call.1} parent=31 // pred_region
          %v223 = vld [vmem:[%s1] sm:$0xf]
          %v224 = vld [vmem:[%s185] sm:$0xf]
          %v225 = vld [vmem:[%s185 + $0x4] sm:$0xf]
          %v226 = vld [vmem:[%s185 + $0x8] sm:$0xf]
          %v227 = vld [vmem:[%s185 + $0xc] sm:$0xf]
          %v228 = vld [vmem:[%s185 + $0x10] sm:$0xf]
          %v229 = vld [vmem:[%s185 + $0x14] sm:$0xf]
          %v230 = vld [vmem:[%s185 + $0x18] sm:$0xf]
          %v231 = vld [vmem:[%s185 + $0x1c] sm:$0xf]
          %v232 = vld [vmem:[%s185 + $0x20] sm:$0xf]
          %v233 = vld [vmem:[%s185 + $0x24] sm:$0xf]
          %v234 = vld [vmem:[%s185 + $0x28] sm:$0xf]
          %v235 = vld [vmem:[%s185 + $0x2c] sm:$0xf]
          %v236 = vld [vmem:[%s185 + $0x30] sm:$0xf]
          %v237 = vld [vmem:[%s185 + $0x34] sm:$0xf]
          %v238 = vld [vmem:[%s185 + $0x38] sm:$0xf]
          %v239 = vld [vmem:[%s185 + $0x3c] sm:$0xf]
          %v256 = vunpack.c.l.b16 %v224
          %v257 = vunpack.c.l.b16 %v225
          %v258 = vunpack.c.l.b16 %v226
          %v259 = vunpack.c.l.b16 %v227
          %v260 = vunpack.c.l.b16 %v228
          %v261 = vunpack.c.l.b16 %v229
          %v262 = vunpack.c.l.b16 %v230
          %v263 = vunpack.c.l.b16 %v231
          %v264 = vunpack.c.l.b16 %v232
          %v265 = vunpack.c.l.b16 %v233
          %v266 = vunpack.c.l.b16 %v234
          %v267 = vunpack.c.l.b16 %v235
          %v268 = vunpack.c.l.b16 %v236
          %v269 = vunpack.c.l.b16 %v237
          %v270 = vunpack.c.l.b16 %v238
          %v271 = vunpack.c.l.b16 %v239
          %v272 = vpack.c.b16 %v257, %v256
          %v273 = vpack.c.b16 %v259, %v258
          %v274 = vpack.c.b16 %v261, %v260
          %v275 = vpack.c.b16 %v263, %v262
          %v276 = vpack.c.b16 %v265, %v264
          %v277 = vpack.c.b16 %v267, %v266
          %v278 = vpack.c.b16 %v269, %v268
          %v279 = vpack.c.b16 %v271, %v270
          %288 = vmatprep.subr.bf16.mxu0 0
          %289 = vmatpush1.bf16.msra.mxu0 %v272
          %290 = vmatprep.subr.bf16.mxu0 0
          %291 = vmatpush1.bf16.msra.mxu0 %v273
          %292 = vmatprep.subr.bf16.mxu0 0
          %293 = vmatpush1.bf16.msra.mxu0 %v274
          %294 = vmatprep.subr.bf16.mxu0 0
          %295 = vmatpush1.bf16.msra.mxu0 %v275
          %296 = vmatprep.subr.bf16.mxu0 0
          %297 = vmatpush1.bf16.msra.mxu0 %v276
          %298 = vmatprep.subr.bf16.mxu0 0
          %299 = vmatpush1.bf16.msra.mxu0 %v277
          %300 = vmatprep.subr.bf16.mxu0 0
          %301 = vmatpush1.bf16.msra.mxu0 %v278
          %302 = vmatprep.subr.bf16.mxu0 0
          %303 = vmatpush1.bf16.msra.mxu0 %v279
          %304 = vmatprep.subr.bf16.mxu0 0
          %305 = vmatpush1.bf16.msra.mxu0 0
          %306 = vmatprep.subr.bf16.mxu0 0
          %307 = vmatpush1.bf16.msra.mxu0 0
          %308 = vmatprep.subr.bf16.mxu0 0
          %309 = vmatpush1.bf16.msra.mxu0 0
          %310 = vmatprep.subr.bf16.mxu0 0
          %311 = vmatpush1.bf16.msra.mxu0 0
          %312 = vmatprep.subr.bf16.mxu0 0
          %313 = vmatpush1.bf16.msra.mxu0 0
          %314 = vmatprep.subr.bf16.mxu0 0
          %315 = vmatpush1.bf16.msra.mxu0 0
          %316 = vmatprep.subr.bf16.mxu0 0
          %317 = vmatpush1.bf16.msra.mxu0 0
          %318 = vmatprep.subr.bf16.mxu0 0
          %319 = vmatpush1.bf16.msra.mxu0 0
          %320 = vmatprep.mubr.bf16.mxu0 0
          %321 = vmatmul.mubr.bf16.gmra.mrb[0].mxu0 %v223
          %v322 = vpop.f32.mrb[0].mxu0
          %v323 = vadd.f32 0.0, %v322
          %v324 = vpop.f32.mrb[0].mxu0
          %v325 = vpop.f32.mrb[0].mxu0
          %v326 = vpop.f32.mrb[0].mxu0
          %327 = vdwg.mxu0
          %s328 = smul.u32 %s25, 128
          %s329 = sshra.s32 %s328, 7
          %s330 = sand.u32 %s328, 127
          %s331 = smul.addr %s329, 8
          %s332 = scalar_lea.vmem [#allocation2], %s331
          %333 = vst [vmem:[%s332] sm:$0xff] %v323
          %v334 = vld [vmem:[#allocation3] sm:$0xff]
          %335 = vadd.xlane.f32.xlu0 %v323
          %v336 = vpop.xlane.xlu0 %335
          %v337 = vadd.f32 %v334, %v336
          %vm338 = vcmask 7168
          %339 = vst.msk [vmem:[#allocation3] sm:$0xff] %vm338, %v337
          %v340 = vld [vmem:[#allocation3] sm:$0xff]
          %v341 = vmul.f32 %v323, %v323
          %342 = vadd.xlane.f32.xlu0 %v341
          %v343 = vpop.xlane.xlu0 %342
          %v344 = vadd.f32 %v340, %v343
          %vm345 = vcmask 15368
          %346 = vst.msk [vmem:[#allocation3] sm:$0xff] %vm345, %v344
        $region44: #{tpu_custom_call.1} parent=31 // pred_fallthru
          _
        %p347 = scmp.eq.s32.totalorder %s24, 1
        %p348 = pnand %p347, %p213
        %p349 = pneg %p348
        // Predicated region
        $region45: #{tpu_custom_call.1} parent=31 // pred_check
          _
        $region46: #{tpu_custom_call.1} parent=31 // pred_check_branch
          %351 = sbr.rel (%p348) target = $region48
        $region47: #{tpu_custom_call.1} parent=31 // pred_region
          %v352 = vld [vmem:[#allocation3] sm:$0xff]
          %v353 = vmul.f32 %v352, 0.0052083335
          %v354 = vmul.f32 %v353, %v353
          %356 = vrot.lane.b32.xlu0 %v354, 1
          %v357 = vpop.permute.xlu0 %356
          %v359 = vsub.f32 %v353, %v357
          %v360 = vmax.f32 %v359, 0.0
          %v361 = vld [vmem:[%s2] sm:$0xff]
          %v362 = vadd.f32 %v360, 1e-05
          %v363 = vrsqrt.pop %v362
          %365 = vrot.lane.b32.xlu0 %v363, 127
          %v366 = vpop.permute.xlu0 %365
          %v368 = vmul.f32 %v361, %v366
          %vm369 = vcmask 7168
          %370 = vst.msk [vmem:[#allocation4] sm:$0xff] %vm369, %v368
          %v371 = vld [vmem:[%s2] sm:$0xff]
          %v372 = vmul.f32 %v353, %v368
          %374 = vrot.lane.b32.xlu0 %v372, 1
          %v375 = vpop.permute.xlu0 %374
          %v377 = vsub.f32 %v371, %v375
          %vm378 = vcmask 15368
          %379 = vst.msk [vmem:[#allocation4] sm:$0xff] %vm378, %v377
        $region48: #{tpu_custom_call.1} parent=31 // pred_fallthru
          _
        // Predicated region
        $region49: #{tpu_custom_call.1} parent=31 // pred_check
          %p380 = pneg %p347
        $region50: #{tpu_custom_call.1} parent=31 // pred_check_branch
          %382 = sbr.rel (%p380) target = $region52
        $region51: #{tpu_custom_call.1} parent=31 // pred_region
          %s383 = smul.u32 %s25, 128
          %s384 = sshra.s32 %s383, 7
          %s385 = sand.u32 %s383, 127
          %s386 = smul.addr %s384, 8
          %s387 = scalar_lea.vmem [#allocation2], %s386
          %v388 = vld [vmem:[%s387] sm:$0xff]
          %v389 = vld [vmem:[#allocation4] sm:$0xff]
          %391 = vset.pattern.permute.xlu0 0
          %392 = vperm.xlu0 %391, %v389
          %v393 = vpop.permute.xlu0 %392
          %v395 = vmul.f32 %v388, %v393
          %396 = vset.pattern.permute.xlu0 1
          %397 = vperm.xlu0 %396, %v389
          %v398 = vpop.permute.xlu0 %397
          %v400 = vadd.f32 %v395, %v398
          %v401 = vmax.f32 %v400, 0.0
          %402 = vst [vmem:[%s207] sm:$0xff] %v401
        $region52: #{tpu_custom_call.1} parent=31 // pred_fallthru
          _
        %s403 = sand.u32 %s114, 1
        %s404 = scalar_lea.sflag [#allocation7], %s403
        %s405 = sand.u32 %s114, 1
        %s406 = smul.addr %s405, 8
        %s407 = scalar_lea.vmem [#allocation8], %s406
        // Predicated region
        $region53: #{tpu_custom_call.1} parent=31 // pred_check
          %p408 = pneg %p124
        $region54: #{tpu_custom_call.1} parent=31 // pred_check_branch
          %410 = sbr.rel (%p408) target = $region56
        $region55: #{tpu_custom_call.1} parent=31 // pred_region
          %s411 = smul.u32 %s25, %s24
          %s413 = ssub.s32 128, 128
          %414 = vsyncadd %s404, %s413
          %s415 = smul.addr %s411, 128
          %s416 = scalar_lea.hbm %s3, %s415
          %s418 = sshll.u32 %s407, 4
          %s419 = int_to_ptr.vmem [resolvable:$true] %s418
          %421 = dma.vmem_to_hbm [thread:$0]  %s419, 128, %s416, %s404
        $region56: #{tpu_custom_call.1} parent=31 // pred_fallthru
          _
      $region32: #{tpu_custom_call.1} parent=5 // pred_fallthru
        _
      %p422 = scmp.le.s32.totalorder 2, %s15
      // Predicated region
      $region57: #{tpu_custom_call.1} parent=5 // pred_check
        %p423 = pneg %p422
      $region58: #{tpu_custom_call.1} parent=5 // pred_check_branch
        %425 = sbr.rel (%p423) target = $region60
      $region59: #{tpu_custom_call.1} parent=5 // pred_region
        %s426 = ssub.s32 %s15, 2
        // Predicated region
        $region61: #{tpu_custom_call.1} parent=59 // pred_check
          %p427 = pneg %p130
        $region62: #{tpu_custom_call.1} parent=59 // pred_check_branch
          %429 = sbr.rel (%p427) target = $region64
        $region63: #{tpu_custom_call.1} parent=59 // pred_region
          %s430 = sand.u32 %s115, 1
          %s431 = scalar_lea.sflag [#allocation7], %s430
          %s432 = sand.u32 %s115, 1
          %s433 = smul.addr %s432, 8
          %s434 = scalar_lea.vmem [#allocation8], %s433
          %435 = dma.done %s431, 128
        $region64: #{tpu_custom_call.1} parent=59 // pred_fallthru
          _
      $region60: #{tpu_custom_call.1} parent=5 // pred_fallthru
        _
    $region6: #{tpu_custom_call.1} parent=1 // loop_footer
      %s19 = sadd.s32 1, %s15
    $region7: #{tpu_custom_call.1} parent=1 // loop_footer_branch
      %14 = sbr.rel target = $region3
    $region8: #{tpu_custom_call.1} parent=1 // loop_exit
      _
    %436 = vsyncpa [#allocation6], 1
    %s437 = scalar_lea.sflag [#allocation6], 1
    %438 = vsyncpa %s437, 1
    %439 = vsyncpa [#allocation7], 1
    %s440 = scalar_lea.sflag [#allocation7], 1
    %441 = vsyncpa %s440, 1

</llo_original>
